<compile_context>
chip_gen: v7x
topology: tpu7x:2x2x1
jax: 0.10.0
libtpu: 0.0.40
codegen_flags: <defaults>
</compile_context>

<pallas_src>
import functools

import jax
import jax.numpy as jnp
from jax.experimental import pallas as pl
from jax.experimental.pallas import tpu as pltpu


def _relu_kernel(x_ref, o_ref):
    # Pure elementwise hot path on the VPU; zero is dtype-matched so integer
    # or low-precision inputs never promote and mismatch the output store.
    x = x_ref[...]
    o_ref[...] = jnp.maximum(x, jnp.zeros((), x.dtype))


def _round_up(v: int, m: int) -> int:
    return ((v + m - 1) // m) * m


def _device_kind() -> str:
    try:
        return jax.devices()[0].device_kind.lower()
    except Exception:
        return ""


@functools.lru_cache(maxsize=None)
def _chip_config():
    """Per-generation block budget.  With default double buffering the VMEM
    footprint is ~4x block_bytes (input + output, 2 buffers each)."""
    kind = _device_kind()
    if "v7" in kind:
        # 4 MiB blocks -> 16 MiB pipelined footprint; v7x has only 64 MiB
        # physical VMEM, so cap the scoped limit at 48 MiB (headroom, safe).
        return {"block_bytes": 4 << 20, "vmem_limit": 48 << 20, "two_cores": True}
    if "v6" in kind:
        # 16 MiB footprint fits v6e's 32 MiB default scoped limit as-is.
        return {"block_bytes": 4 << 20, "vmem_limit": None, "two_cores": False}
    # v5e (16 MiB default scoped limit), v5p, v4, unknown: 2 MiB blocks ->
    # 8 MiB footprint, safely under every default limit.
    return {"block_bytes": 2 << 20, "vmem_limit": None, "two_cores": False}


def _sublane_multiple(itemsize: int) -> int:
    # Packed sublanes: f32 -> 8, bf16/f16 -> 16, int8/fp8 -> 32.
    return max(8, 32 // max(itemsize, 1))


def _lane_dense_view(M: int, N: int, itemsize: int, sub: int, block_bytes: int):
    """Pick a (rows, lanes) view of the contiguous M*N buffer with a wide,
    128-aligned lane dim (unmasked vld/vst) and >= `sub` rows (full vregs)."""
    total = M * N
    max_lanes = max(128, ((block_bytes // (itemsize * sub)) // 128) * 128)
    # Original already lane-aligned, sublane-filled and within lane budget.
    if N % 128 == 0 and N <= max_lanes and M >= sub:
        return M, N
    start = min(max_lanes, (total // 128) * 128)
    lanes = start
    while lanes >= 128:
        if total % lanes == 0 and total // lanes >= sub:
            return total // lanes, lanes
        lanes -= 128
    if N < 128:
        # Original view wastes lanes; accept shallow rows if it widens lanes.
        lanes = start
        while lanes >= 128:
            if total % lanes == 0:
                return total // lanes, lanes
            lanes -= 128
    return M, N


def _pick_tiles(R: int, C: int, itemsize: int, sub: int, block_bytes: int):
    budget_elems = max(block_bytes // itemsize, sub * 128)
    # Lane (last) dim: full width when a `sub`-row slab of it fits the
    # budget, otherwise the widest 128-multiple that does (uncapped).
    if C * sub <= budget_elems:
        tn = C
    else:
        tn = max(128, ((budget_elems // sub) // 128) * 128)
    # Sublane (second-last) dim: full height if it fits, else a multiple of
    # the dtype's packed-sublane count sized to the remaining budget.
    budget_rows = max(sub, budget_elems // max(tn, 1))
    if R <= budget_rows:
        tm = R
    else:
        tm = max(sub, (budget_rows // sub) * sub)
    return tm, tn


def relu_pallas(x: jax.Array, *, donate: bool = False) -> jax.Array:
    """Elementwise ReLU (torch.relu) via a tiled, lane-dense Pallas TPU kernel."""
    assert x.ndim == 2, "ElementwiseReluModule expects a rank-2 tensor"
    M, N = x.shape
    if M == 0 or N == 0:
        return x

    cfg = _chip_config()
    block_bytes = cfg["block_bytes"]
    itemsize = x.dtype.itemsize
    sub = _sublane_multiple(itemsize)

    # Reshape of a contiguous row-major buffer: layout plumbing only.
    R, C = _lane_dense_view(M, N, itemsize, sub, block_bytes)
    xv = x.reshape(R, C)

    tm, tn = _pick_tiles(R, C, itemsize, sub, block_bytes)

    # v7x has 2 TensorCores: make sure a single-block problem still produces
    # >= 2 parallel programs so both cores stream HBM.
    if cfg["two_cores"] and pl.cdiv(R, tm) * pl.cdiv(C, tn) == 1:
        if R >= 2 * sub:
            tm = _round_up(pl.cdiv(R, 2), sub)
        elif C >= 256:
            tn = _round_up(pl.cdiv(C, 2), 128)

    grid = (pl.cdiv(R, tm), pl.cdiv(C, tn))

    cp_kwargs = dict(dimension_semantics=("parallel", "parallel"))
    if cfg["vmem_limit"] is not None:
        cp_kwargs["vmem_limit_bytes"] = cfg["vmem_limit"]

    call_kwargs = {}
    if donate:
        # Reuse x's HBM buffer for the output (no second full-size allocation).
        call_kwargs["input_output_aliases"] = {0: 0}

    out = pl.pallas_call(
        _relu_kernel,
        out_shape=jax.ShapeDtypeStruct((R, C), x.dtype),
        grid=grid,
        in_specs=[pl.BlockSpec((tm, tn), lambda i, j: (i, j))],
        out_specs=pl.BlockSpec((tm, tn), lambda i, j: (i, j)),
        compiler_params=pltpu.CompilerParams(**cp_kwargs),
        **call_kwargs,
    )(xv)

    return out.reshape(M, N)


if __name__ == "__main__":
    key = jax.random.PRNGKey(0)
    k1, k2, k3 = jax.random.split(key, 3)

    # Small shape consistent with the ([-1, -1], float32) annotation.
    x = jax.random.normal(k1, (8, 32), dtype=jnp.float32)
    y = jax.block_until_ready(relu_pallas(x))
    assert y.shape == x.shape and y.dtype == x.dtype
    assert jnp.allclose(y, jnp.maximum(x, 0.0)), "Pallas ReLU mismatch"

    # Non-(8,128)-aligned shape: exercises the masked edge-block path.
    x2 = jax.random.normal(k2, (37, 300), dtype=jnp.float32)
    y2 = jax.block_until_ready(relu_pallas(x2))
    assert jnp.allclose(y2, jnp.maximum(x2, 0.0)), "Pallas ReLU mismatch (edge)"

    # Short buffer with few rows: exercises the lane-dense rebalance path.
    x3 = jax.random.normal(k3, (4, 2048), dtype=jnp.float32)
    y3 = jax.block_until_ready(relu_pallas(x3))
    assert jnp.allclose(y3, jnp.maximum(x3, 0.0)), "Pallas ReLU mismatch (rebalanced)"

    print("KERNEL_OK")
</pallas_src>

<mosaic_0001>
module attributes {stable_mosaic.version = 11 : i64} {
  func.func @_relu_kernel(%arg0: i32, %arg1: i32, %arg2: memref<1x256xf32, #tpu.memory_space<vmem>>, %arg3: memref<1x256xf32, #tpu.memory_space<vmem>>) attributes {dimension_semantics = [#tpu.dimension_semantics<parallel>, #tpu.dimension_semantics<parallel>], iteration_bounds = array<i64: 1, 1>, scalar_prefetch = 0 : i64, scratch_operands = 0 : i64, tpu.core_type = #tpu.core_type<tc>, window_params = [{transform_indices = @transform_0, window_bounds = array<i64: 1, 256>}, {transform_indices = @transform_1, window_bounds = array<i64: 1, 256>}]} {
    %c0 = arith.constant 0 : index
    %c0_0 = arith.constant 0 : index
    %0 = vector.load %arg2[%c0, %c0_0] : memref<1x256xf32, #tpu.memory_space<vmem>>, vector<1x256xf32>
    %cst = arith.constant 0.000000e+00 : f32
    %1 = vector.broadcast %cst : f32 to vector<1x256xf32>
    %2 = arith.maximumf %0, %1 : vector<1x256xf32>
    %c0_1 = arith.constant 0 : index
    %c0_2 = arith.constant 0 : index
    %3 = vector.load %arg3[%c0_1, %c0_2] : memref<1x256xf32, #tpu.memory_space<vmem>>, vector<1x256xf32>
    tpu.vector_store %arg3[%c0_1, %c0_2], %2 {strides = array<i32>} : memref<1x256xf32, #tpu.memory_space<vmem>>, vector<1x256xf32>,
    return
  }
  func.func @transform_0(%arg0: i32, %arg1: i32) -> (i32, i32) {
    %c0_i32 = arith.constant 0 : i32
    return %arg0, %arg1 : i32, i32
  }
  func.func @transform_1(%arg0: i32, %arg1: i32) -> (i32, i32) {
    %c0_i32 = arith.constant 0 : i32
    return %arg0, %arg1 : i32, i32
  }
}

</mosaic_0001>

<llo_original>
// kernel: tpu_custom_call.1
$region0: #{tpu_custom_call.1}
  #allocation0 [shape = 'u32[]', space=smem, size = 0x4, offset = 0x4, fixed_abs, tag = 'smem constant byte address 0x4 - core index']
  #allocation1 [shape = 'u32[144,128]{1,0:T(1,128)}', space=vmem, size = 0x12000, scoped, tag = 'internal scratch']
  %s0 = inlined_call_operand.hbm [shape: f32[1,256], index: 0, kind: input, shape index: {}]
  %s1 = inlined_call_operand.hbm [shape: f32[1,256], index: 1, kind: output, shape index: {}]
  %s2 = sld [smem:[#allocation0]]
  $region18: #{tpu_custom_call.1} parent=0
    _
  %s4 = ssub.s32 1, %s2
  %s5 = scalar_select 0, %s4, %s2
  $region1: #{tpu_custom_call.1} parent=0
    #allocation2 [shape = 'u8[1024]{0}', space=vmem, size = 0x400, scoped, tag = 'input window, operand 0, single buffered']
    #allocation3 [shape = 's32[1]{0}', space=sflag, size = 0x4, scoped, tag = 'scoped memory for tpu_custom_call.1']
    #allocation4 [shape = 's32[1]{0}', space=sflag, size = 0x4, scoped, tag = 'scoped memory for tpu_custom_call.1']
    #allocation5 [shape = 'u8[1024]{0}', space=vmem, size = 0x400, scoped, tag = 'output window, operand 0, single buffered']
    %6 = vsyncpa [#allocation3], 0
    %7 = vsyncpa [#allocation4], 0
    // Predicated region
    $region2: #{tpu_custom_call.1} parent=1 // pred_check
      _
    $region3: #{tpu_custom_call.1} parent=1 // pred_check_branch
      %9 = sbr.rel (0) target = $region5
    $region4: #{tpu_custom_call.1} parent=1 // pred_region
      %s11 = ssub.s32 32, 32
      %12 = vsyncadd [#allocation3], %s11
      %s14 = sshll.u32 [#allocation2], 4
      %s15 = int_to_ptr.vmem [resolvable:$true] %s14
      %17 = dma.hbm_to_vmem [thread:$0]  %s0, 32, %s15, [#allocation3]
    $region5: #{tpu_custom_call.1} parent=1 // pred_fallthru
      _
    // Predicated region
    $region6: #{tpu_custom_call.1} parent=1 // pred_check
      _
    $region7: #{tpu_custom_call.1} parent=1 // pred_check_branch
      %19 = sbr.rel (0) target = $region9
    $region8: #{tpu_custom_call.1} parent=1 // pred_region
      %20 = dma.done [#allocation3], 32
    $region9: #{tpu_custom_call.1} parent=1 // pred_fallthru
      _
    %v21 = vld [vmem:[#allocation2] sm:$0x3]
    %v22 = vmax.f32 %v21, 0.0
    %v23 = vlaneseq
    %vm24 = vcmp.ge.s32.totalorder %v23, 0
    %vm25 = vcmp.lt.s32.totalorder %v23, 256
    %vm26 = vmand %vm24, %vm25
    %27 = vst.msk [vmem:[#allocation5] sm:$0x3] %vm26, %v22
    // Predicated region
    $region10: #{tpu_custom_call.1} parent=1 // pred_check
      _
    $region11: #{tpu_custom_call.1} parent=1 // pred_check_branch
      %29 = sbr.rel (0) target = $region13
    $region12: #{tpu_custom_call.1} parent=1 // pred_region
      %s31 = ssub.s32 32, 32
      %32 = vsyncadd [#allocation4], %s31
      %s34 = sshll.u32 [#allocation5], 4
      %s35 = int_to_ptr.vmem [resolvable:$true] %s34
      %37 = dma.vmem_to_hbm [thread:$0]  %s35, 32, %s1, [#allocation4]
    $region13: #{tpu_custom_call.1} parent=1 // pred_fallthru
      _
    // Predicated region
    $region14: #{tpu_custom_call.1} parent=1 // pred_check
      _
    $region15: #{tpu_custom_call.1} parent=1 // pred_check_branch
      %39 = sbr.rel (0) target = $region17
    $region16: #{tpu_custom_call.1} parent=1 // pred_region
      %40 = dma.done [#allocation4], 32
    $region17: #{tpu_custom_call.1} parent=1 // pred_fallthru
      _
    %41 = vsyncpa [#allocation3], 1
    %42 = vsyncpa [#allocation4], 1

</llo_original>
